<compile_context>
chip_gen: v7x
topology: tpu7x:2x2x1
jax: 0.10.0
libtpu: 0.0.40
codegen_flags: <defaults>
</compile_context>

<pallas_src>
import functools

import jax
import jax.numpy as jnp
from jax.experimental import pallas as pl
from jax.experimental.pallas import tpu as pltpu


def _cdiv(a, b):
    return -(-a // b)


def _sew_kernel(x_ref, w1_ref, b1_ref, w2_ref, b2_ref, o_ref, acc_ref, h_ref,
                *, inv_hw, hw, thw, c_true, tc):
    # x_ref: (TN, TC, THW)   w1_ref: (TC, Ch)  b1_ref: (1, Ch)
    # w2_ref: (Ch, C)        b2_ref: (1, C)    o_ref: (TN, C)
    # acc_ref: (TN, TC) f32  -- spatial-sum accumulator for the current c tile
    # h_ref:   (TN, Ch) f32  -- fc1 accumulator, persists across all c tiles
    c = pl.program_id(1)
    k = pl.program_id(2)
    nc = pl.num_programs(1)
    nk = pl.num_programs(2)

    mask_hw = (hw % thw) != 0      # static: last lane tile is ragged
    mask_c = (c_true % tc) != 0    # static: last channel tile is ragged

    @pl.when((c == 0) & (k == 0))
    def _init_fc1():
        h_ref[...] = jnp.zeros_like(h_ref)

    @pl.when(k == 0)
    def _init_acc():
        acc_ref[...] = jnp.zeros_like(acc_ref)

    def _partial_sum(apply_mask):
        x = x_ref[...]
        if apply_mask:
            lane = jax.lax.broadcasted_iota(jnp.int32, x.shape, 2)
            x = jnp.where(k * thw + lane < hw, x, 0.0)
        acc_ref[...] += jnp.sum(x, axis=-1, dtype=jnp.float32)

    if mask_hw:
        # Keep the steady-state loop mask-free; only the last lane tile pays.
        @pl.when(k < nk - 1)
        def _steady():
            _partial_sum(False)
    else:
        _partial_sum(False)

    @pl.when(k == nk - 1)
    def _channel_tile_done():
        if mask_hw:
            _partial_sum(True)
        avg = acc_ref[...] * inv_hw                                   # (TN, TC)
        if mask_c:
            ch_idx = jax.lax.broadcasted_iota(jnp.int32, avg.shape, 1)
            avg = jnp.where(c * tc + ch_idx < c_true, avg, 0.0)
        # Fold this channel tile's mean into the fc1 accumulator (tiny MXU op).
        h_ref[...] += jnp.dot(avg, w1_ref[...],
                              preferred_element_type=jnp.float32)

    @pl.when((c == nc - 1) & (k == nk - 1))
    def _finalize():
        h = jnp.maximum(h_ref[...] + b1_ref[...], 0.0)                # (TN, Ch)
        out = jnp.dot(h, w2_ref[...],
                      preferred_element_type=jnp.float32) + b2_ref[...]
        o_ref[...] = jax.nn.sigmoid(out).astype(o_ref.dtype)


def _default_block_bytes():
    # ~4 MiB blocks reach ~85%+ of HBM roofline on v5e/v6e; v7x (64 MiB VMEM,
    # ~3.2 TB/s HBM) wants ~8 MiB blocks to keep the same overhead ratio.
    try:
        info = pltpu.get_tpu_info()
        if getattr(info, "vmem_capacity_bytes", 128 << 20) <= (80 << 20):
            return 8 << 20
    except Exception:
        pass
    return 4 << 20


def _pick_tiles(C, HW, TN, itemsize, budget):
    """Choose (TC, THW) for the (TN, TC, THW) x block under a byte budget."""
    elem = TN * itemsize
    # 1) Whole (C, HW) plane per batch tile fits: single, fully contiguous block.
    if C * HW * elem <= budget:
        return C, HW
    min_tc = C if C < 8 else 8
    # 2) Tile channels, keep full-HW rows: each (n, c-range, :) slab stays
    #    contiguous in HBM -> best DMA efficiency (the large-C regime).
    if min_tc * HW * elem <= budget:
        tc = (budget // (HW * elem)) // 8 * 8
        tc = max(min_tc, min(tc, C))
        return tc, HW
    # 3) HW is huge: also tile the lane axis (multiple of 128).  DMA chunks are
    #    THW*itemsize either way, so keep the channel tile as wide as allowed.
    tc = (budget // (128 * elem)) // 8 * 8
    tc = max(min_tc, min(tc, C))
    thw = (budget // (tc * elem)) // 128 * 128
    thw = max(128, thw)
    if thw >= HW:
        thw = HW
    return tc, thw


def sew_module(x_nchw, w1, b1, w2, b2, *, block_target_bytes=None):
    """x_nchw: (N, C, H, W);  w1: (C, Ch), b1: (Ch,), w2: (Ch, C), b2: (C,).

    Returns channel attention weights, shape (N, C, 1, 1), matching PyTorch.
    """
    N, C, H, W = x_nchw.shape
    Ch = w1.shape[1]
    HW = H * W
    itemsize = jnp.dtype(x_nchw.dtype).itemsize

    # Fixed batch tile (rows are independent; ragged last batch block relies on
    # Pallas boundary semantics: OOB output rows are dropped on writeback).
    TN = N if N < 8 else 8

    budget = block_target_bytes if block_target_bytes is not None else _default_block_bytes()
    TC, THW = _pick_tiles(C, HW, TN, itemsize, budget)

    n_n = _cdiv(N, TN)
    n_c = _cdiv(C, TC)
    n_k = _cdiv(HW, THW)

    x_flat = x_nchw.reshape(N, C, HW)        # contiguous reshape, no data movement

    # Zero-pad w1 rows only when the channel tiling is ragged (tiny, keeps the
    # masked last channel tile's matmul free of non-finite garbage).
    c_rows = n_c * TC
    w1_in = w1 if c_rows == C else jnp.pad(w1, ((0, c_rows - C), (0, 0)))

    b1_2d = b1.reshape(1, Ch)
    b2_2d = b2.reshape(1, C)

    kernel = functools.partial(_sew_kernel, inv_hw=1.0 / HW, hw=HW, thw=THW,
                               c_true=C, tc=TC)

    grid_spec = pltpu.PrefetchScalarGridSpec(
        num_scalar_prefetch=0,
        grid=(n_n, n_c, n_k),
        in_specs=[
            pl.BlockSpec((TN, TC, THW), lambda n, c, k: (n, c, k)),
            pl.BlockSpec((TC, Ch), lambda n, c, k: (c, 0)),
            pl.BlockSpec((1, Ch), lambda n, c, k: (0, 0)),
            pl.BlockSpec((Ch, C), lambda n, c, k: (0, 0)),
            pl.BlockSpec((1, C), lambda n, c, k: (0, 0)),
        ],
        out_specs=pl.BlockSpec((TN, C), lambda n, c, k: (n, 0)),
        scratch_shapes=[pltpu.VMEM((TN, TC), jnp.float32),
                        pltpu.VMEM((TN, Ch), jnp.float32)],
    )

    # Explicit scoped-VMEM limit: never below the generation defaults, generous
    # enough for the double-buffered x stream, and <= v7x's 64 MiB physical.
    block_bytes = TN * TC * THW * itemsize
    vmem_limit = int(min(48 << 20, max(32 << 20, 4 * block_bytes)))

    # Advisory cost: this op is dominated by streaming x from HBM.
    w_bytes = (w1_in.size + b1.size + w2.size + b2.size) * jnp.dtype(w1.dtype).itemsize
    cost = pl.CostEstimate(
        flops=int(N * C * HW + 4 * N * C * Ch),
        transcendentals=int(N * C),
        bytes_accessed=int(x_flat.size * itemsize + w_bytes + N * C * itemsize),
    )

    out = pl.pallas_call(
        kernel,
        out_shape=jax.ShapeDtypeStruct((N, C), x_nchw.dtype),
        grid_spec=grid_spec,
        compiler_params=pltpu.CompilerParams(
            dimension_semantics=("parallel", "arbitrary", "arbitrary"),
            vmem_limit_bytes=vmem_limit),
        cost_estimate=cost,
    )(x_flat, w1_in, b1_2d, w2, b2_2d)

    return out.reshape(N, C, 1, 1)


def init_params(key, channels, reduction=16, dtype=jnp.float32):
    """Deterministic synthetic init mirroring Conv2d(k=1) parameter shapes.

    PyTorch conv1 weight (Ch, C, 1, 1) -> stored transposed as (C, Ch) so the
    kernel computes avg @ w1;  conv2 weight (C, Ch, 1, 1) -> stored as (Ch, C).
    """
    ch = channels // reduction
    k1, k2, k3, k4 = jax.random.split(key, 4)
    s1 = 1.0 / jnp.sqrt(channels)
    s2 = 1.0 / jnp.sqrt(ch)
    w1 = jax.random.uniform(k1, (channels, ch), dtype, -s1, s1)
    b1 = jax.random.uniform(k2, (ch,), dtype, -s1, s1)
    w2 = jax.random.uniform(k3, (ch, channels), dtype, -s2, s2)
    b2 = jax.random.uniform(k4, (channels,), dtype, -s2, s2)
    return w1, b1, w2, b2


def _reference(x, w1, b1, w2, b2):
    """Plain-JAX reference of the PyTorch forward."""
    avg = jnp.mean(x, axis=(2, 3))                    # (N, C)
    h = jnp.maximum(avg @ w1 + b1, 0.0)               # (N, Ch)
    out = jax.nn.sigmoid(h @ w2 + b2)                 # (N, C)
    return out[:, :, None, None]


if __name__ == "__main__":
    key = jax.random.PRNGKey(0)
    kx1, kx2, kx3, kp1, kp2 = jax.random.split(key, 5)

    reduction = 16

    # Case 1: single-block fast path (whole (C, HW) plane fits per batch tile).
    C1 = 32
    w1, b1, w2, b2 = init_params(kp1, C1, reduction)
    x1 = jax.random.normal(kx1, (2, C1, 16, 16), jnp.float32)
    out1 = jax.block_until_ready(sew_module(x1, w1, b1, w2, b2))
    ref1 = _reference(x1, w1, b1, w2, b2)
    assert out1.shape == (2, C1, 1, 1), out1.shape
    assert jnp.allclose(out1, ref1, atol=1e-5, rtol=1e-5), float(
        jnp.max(jnp.abs(out1 - ref1)))

    # Case 2: ragged batch (N=10 -> TN=8, last batch block partially OOB,
    # writes to the OOB rows are dropped).
    x2 = jax.random.normal(kx2, (10, C1, 7, 7), jnp.float32)
    out2 = jax.block_until_ready(sew_module(x2, w1, b1, w2, b2))
    ref2 = _reference(x2, w1, b1, w2, b2)
    assert out2.shape == (10, C1, 1, 1), out2.shape
    assert jnp.allclose(out2, ref2, atol=1e-5, rtol=1e-5), float(
        jnp.max(jnp.abs(out2 - ref2)))

    # Case 3: tiny forced budget to exercise channel + lane tiling with ragged
    # edges on both axes (C=36 -> TC=8, 5 channel tiles; HW=144 -> THW=128,
    # 2 lane tiles with a masked tail).
    C3 = 36
    w1b, b1b, w2b, b2b = init_params(kp2, C3, reduction)
    x3 = jax.random.normal(kx3, (2, C3, 12, 12), jnp.float32)
    out3 = jax.block_until_ready(
        sew_module(x3, w1b, b1b, w2b, b2b, block_target_bytes=8 * 1024))
    ref3 = _reference(x3, w1b, b1b, w2b, b2b)
    assert out3.shape == (2, C3, 1, 1), out3.shape
    assert jnp.allclose(out3, ref3, atol=1e-5, rtol=1e-5), float(
        jnp.max(jnp.abs(out3 - ref3)))

    print("KERNEL_OK")
</pallas_src>

<mosaic_0001>
module attributes {stable_mosaic.version = 11 : i64} {
  func.func @_sew_kernel(%arg0: i32, %arg1: i32, %arg2: i32, %arg3: memref<2x32x256xf32, #tpu.memory_space<vmem>>, %arg4: memref<32x2xf32, #tpu.memory_space<vmem>>, %arg5: memref<1x2xf32, #tpu.memory_space<vmem>>, %arg6: memref<2x32xf32, #tpu.memory_space<vmem>>, %arg7: memref<1x32xf32, #tpu.memory_space<vmem>>, %arg8: memref<2x32xf32, #tpu.memory_space<vmem>>, %arg9: memref<2x32xf32, #tpu.memory_space<vmem>>, %arg10: memref<2x2xf32, #tpu.memory_space<vmem>>) attributes {dimension_semantics = [#tpu.dimension_semantics<parallel>, #tpu.dimension_semantics<arbitrary>, #tpu.dimension_semantics<arbitrary>], iteration_bounds = array<i64: 1, 1, 1>, scalar_prefetch = 0 : i64, scratch_operands = 2 : i64, tpu.core_type = #tpu.core_type<tc>, window_params = [{transform_indices = @transform_0, window_bounds = array<i64: 2, 32, 256>}, {transform_indices = @transform_1, window_bounds = array<i64: 32, 2>}, {pipeline_mode = #tpu.pipeline_mode<synchronous>, transform_indices = @transform_2, window_bounds = array<i64: 1, 2>}, {pipeline_mode = #tpu.pipeline_mode<synchronous>, transform_indices = @transform_3, window_bounds = array<i64: 2, 32>}, {pipeline_mode = #tpu.pipeline_mode<synchronous>, transform_indices = @transform_4, window_bounds = array<i64: 1, 32>}, {transform_indices = @transform_5, window_bounds = array<i64: 2, 32>}]} {
    %c0_i32 = arith.constant 0 : i32
    %0 = arith.cmpi eq, %arg1, %c0_i32 : i32
    %c0_i32_0 = arith.constant 0 : i32
    %1 = arith.cmpi eq, %arg2, %c0_i32_0 : i32
    %2 = arith.andi %0, %1 : i1
    %3 = arith.extui %2 : i1 to i32
    %c0_i32_1 = arith.constant 0 : i32
    %4 = arith.cmpi ne, %3, %c0_i32_1 : i32
    scf.if %4 {
      %cst_15 = arith.constant 0.000000e+00 : f32
      %21 = vector.broadcast %cst_15 : f32 to vector<2x2xf32>
      %c0_16 = arith.constant 0 : index
      %c0_17 = arith.constant 0 : index
      %22 = vector.load %arg10[%c0_16, %c0_17] : memref<2x2xf32, #tpu.memory_space<vmem>>, vector<2x2xf32>
      tpu.vector_store %arg10[%c0_16, %c0_17], %21 {strides = array<i32>} : memref<2x2xf32, #tpu.memory_space<vmem>>, vector<2x2xf32>,
    } else {
    }
    %c0_i32_2 = arith.constant 0 : i32
    %5 = arith.cmpi eq, %arg2, %c0_i32_2 : i32
    %6 = arith.extui %5 : i1 to i32
    %c0_i32_3 = arith.constant 0 : i32
    %7 = arith.cmpi ne, %6, %c0_i32_3 : i32
    scf.if %7 {
      %cst_15 = arith.constant 0.000000e+00 : f32
      %21 = vector.broadcast %cst_15 : f32 to vector<2x32xf32>
      %c0_16 = arith.constant 0 : index
      %c0_17 = arith.constant 0 : index
      %22 = vector.load %arg9[%c0_16, %c0_17] : memref<2x32xf32, #tpu.memory_space<vmem>>, vector<2x32xf32>
      tpu.vector_store %arg9[%c0_16, %c0_17], %21 {strides = array<i32>} : memref<2x32xf32, #tpu.memory_space<vmem>>, vector<2x32xf32>,
    } else {
    }
    %c0 = arith.constant 0 : index
    %c0_4 = arith.constant 0 : index
    %c0_5 = arith.constant 0 : index
    %8 = vector.load %arg3[%c0, %c0_4, %c0_5] : memref<2x32x256xf32, #tpu.memory_space<vmem>>, vector<2x32x256xf32>
    %c0_6 = arith.constant 0 : index
    %c0_7 = arith.constant 0 : index
    %9 = vector.load %arg9[%c0_6, %c0_7] : memref<2x32xf32, #tpu.memory_space<vmem>>, vector<2x32xf32>
    %cst = arith.constant dense<0.000000e+00> : vector<2x32xf32>
    %10 = vector.multi_reduction <add>, %8, %cst [2] : vector<2x32x256xf32> to vector<2x32xf32>
    %11 = arith.addf %9, %10 : vector<2x32xf32>
    %c0_8 = arith.constant 0 : index
    %c0_9 = arith.constant 0 : index
    %12 = vector.load %arg9[%c0_8, %c0_9] : memref<2x32xf32, #tpu.memory_space<vmem>>, vector<2x32xf32>
    tpu.vector_store %arg9[%c0_8, %c0_9], %11 {strides = array<i32>} : memref<2x32xf32, #tpu.memory_space<vmem>>, vector<2x32xf32>,
    %c0_i32_10 = arith.constant 0 : i32
    %13 = arith.cmpi eq, %arg2, %c0_i32_10 : i32
    %14 = arith.extui %13 : i1 to i32
    %c0_i32_11 = arith.constant 0 : i32
    %15 = arith.cmpi ne, %14, %c0_i32_11 : i32
    scf.if %15 {
      %c0_15 = arith.constant 0 : index
      %c0_16 = arith.constant 0 : index
      %21 = vector.load %arg9[%c0_15, %c0_16] : memref<2x32xf32, #tpu.memory_space<vmem>>, vector<2x32xf32>
      %cst_17 = arith.constant 3.906250e-03 : f32
      %22 = vector.broadcast %cst_17 : f32 to vector<2x32xf32>
      %23 = arith.mulf %21, %22 : vector<2x32xf32>
      %c0_18 = arith.constant 0 : index
      %c0_19 = arith.constant 0 : index
      %24 = vector.load %arg10[%c0_18, %c0_19] : memref<2x2xf32, #tpu.memory_space<vmem>>, vector<2x2xf32>
      %c0_20 = arith.constant 0 : index
      %c0_21 = arith.constant 0 : index
      %25 = vector.load %arg4[%c0_20, %c0_21] : memref<32x2xf32, #tpu.memory_space<vmem>>, vector<32x2xf32>
      %cst_22 = arith.constant dense<0.000000e+00> : vector<2x2xf32>
      %26 = tpu.matmul %23, %25, %cst_22 {dimension_numbers = #tpu.dot_dimension_numbers<[1], [0], [0], [1], [0, 0, 1, 1], [], []>} : vector<2x32xf32>, vector<32x2xf32>, vector<2x2xf32> -> vector<2x2xf32>
      %27 = arith.addf %24, %26 : vector<2x2xf32>
      %c0_23 = arith.constant 0 : index
      %c0_24 = arith.constant 0 : index
      %28 = vector.load %arg10[%c0_23, %c0_24] : memref<2x2xf32, #tpu.memory_space<vmem>>, vector<2x2xf32>
      tpu.vector_store %arg10[%c0_23, %c0_24], %27 {strides = array<i32>} : memref<2x2xf32, #tpu.memory_space<vmem>>, vector<2x2xf32>,
    } else {
    }
    %c0_i32_12 = arith.constant 0 : i32
    %16 = arith.cmpi eq, %arg1, %c0_i32_12 : i32
    %c0_i32_13 = arith.constant 0 : i32
    %17 = arith.cmpi eq, %arg2, %c0_i32_13 : i32
    %18 = arith.andi %16, %17 : i1
    %19 = arith.extui %18 : i1 to i32
    %c0_i32_14 = arith.constant 0 : i32
    %20 = arith.cmpi ne, %19, %c0_i32_14 : i32
    scf.if %20 {
      %c0_15 = arith.constant 0 : index
      %c0_16 = arith.constant 0 : index
      %21 = vector.load %arg10[%c0_15, %c0_16] : memref<2x2xf32, #tpu.memory_space<vmem>>, vector<2x2xf32>
      %c0_17 = arith.constant 0 : index
      %c0_18 = arith.constant 0 : index
      %22 = vector.load %arg5[%c0_17, %c0_18] : memref<1x2xf32, #tpu.memory_space<vmem>>, vector<1x2xf32>
      %23 = vector.broadcast %22 : vector<1x2xf32> to vector<2x2xf32>
      %24 = arith.addf %21, %23 : vector<2x2xf32>
      %cst_19 = arith.constant 0.000000e+00 : f32
      %25 = vector.broadcast %cst_19 : f32 to vector<2x2xf32>
      %26 = arith.maximumf %24, %25 : vector<2x2xf32>
      %c0_20 = arith.constant 0 : index
      %c0_21 = arith.constant 0 : index
      %27 = vector.load %arg6[%c0_20, %c0_21] : memref<2x32xf32, #tpu.memory_space<vmem>>, vector<2x32xf32>
      %cst_22 = arith.constant dense<0.000000e+00> : vector<2x32xf32>
      %28 = tpu.matmul %26, %27, %cst_22 {dimension_numbers = #tpu.dot_dimension_numbers<[1], [0], [0], [1], [0, 0, 1, 1], [], []>} : vector<2x2xf32>, vector<2x32xf32>, vector<2x32xf32> -> vector<2x32xf32>
      %c0_23 = arith.constant 0 : index
      %c0_24 = arith.constant 0 : index
      %29 = vector.load %arg7[%c0_23, %c0_24] : memref<1x32xf32, #tpu.memory_space<vmem>>, vector<1x32xf32>
      %30 = vector.broadcast %29 : vector<1x32xf32> to vector<2x32xf32>
      %31 = arith.addf %28, %30 : vector<2x32xf32>
      %32 = arith.negf %31 : vector<2x32xf32>
      %33 = math.exp %32 : vector<2x32xf32>
      %cst_25 = arith.constant 1.000000e+00 : f32
      %34 = vector.broadcast %cst_25 : f32 to vector<2x32xf32>
      %35 = arith.addf %34, %33 : vector<2x32xf32>
      %36 = arith.divf %34, %35 : vector<2x32xf32>
      %c0_26 = arith.constant 0 : index
      %c0_27 = arith.constant 0 : index
      %37 = vector.load %arg8[%c0_26, %c0_27] : memref<2x32xf32, #tpu.memory_space<vmem>>, vector<2x32xf32>
      tpu.vector_store %arg8[%c0_26, %c0_27], %36 {strides = array<i32>} : memref<2x32xf32, #tpu.memory_space<vmem>>, vector<2x32xf32>,
    } else {
    }
    return
  }
  func.func @transform_0(%arg0: i32, %arg1: i32, %arg2: i32) -> (i32, i32, i32) {
    %c0_i32 = arith.constant 0 : i32
    return %arg0, %arg1, %arg2 : i32, i32, i32
  }
  func.func @transform_1(%arg0: i32, %arg1: i32, %arg2: i32) -> (i32, i32) {
    %c0_i32 = arith.constant 0 : i32
    %c0_i32_0 = arith.constant 0 : i32
    return %arg1, %c0_i32 : i32, i32
  }
  func.func @transform_2(%arg0: i32, %arg1: i32, %arg2: i32) -> (i32, i32) {
    %c0_i32 = arith.constant 0 : i32
    %c0_i32_0 = arith.constant 0 : i32
    %c0_i32_1 = arith.constant 0 : i32
    return %c0_i32, %c0_i32_0 : i32, i32
  }
  func.func @transform_3(%arg0: i32, %arg1: i32, %arg2: i32) -> (i32, i32) {
    %c0_i32 = arith.constant 0 : i32
    %c0_i32_0 = arith.constant 0 : i32
    %c0_i32_1 = arith.constant 0 : i32
    return %c0_i32, %c0_i32_0 : i32, i32
  }
  func.func @transform_4(%arg0: i32, %arg1: i32, %arg2: i32) -> (i32, i32) {
    %c0_i32 = arith.constant 0 : i32
    %c0_i32_0 = arith.constant 0 : i32
    %c0_i32_1 = arith.constant 0 : i32
    return %c0_i32, %c0_i32_0 : i32, i32
  }
  func.func @transform_5(%arg0: i32, %arg1: i32, %arg2: i32) -> (i32, i32) {
    %c0_i32 = arith.constant 0 : i32
    %c0_i32_0 = arith.constant 0 : i32
    return %arg0, %c0_i32 : i32, i32
  }
}

</mosaic_0001>

<llo_original>
// kernel: tpu_custom_call.1
$region0: #{tpu_custom_call.1}
  #allocation0 [shape = 'u32[]', space=smem, size = 0x4, offset = 0x4, fixed_abs, tag = 'smem constant byte address 0x4 - core index']
  #allocation1 [shape = 'u32[144,128]{1,0:T(1,128)}', space=vmem, size = 0x12000, scoped, tag = 'internal scratch']
  #allocation2 [shape = 'f32[2,32]{1,0:T(2,128)}', space=vmem, size = 0x400, scoped, tag = 'scratch operand']
  #allocation3 [shape = 'f32[2,2]{1,0:T(2,128)}', space=vmem, size = 0x400, scoped, tag = 'scratch operand']
  %s0 = inlined_call_operand.hbm [shape: f32[2,32,256], index: 0, kind: input, shape index: {}]
  %s1 = inlined_call_operand.vmem [shape: f32[32,2], index: 1, kind: input, shape index: {}]
  %s2 = inlined_call_operand.vmem [shape: f32[1,2], index: 2, kind: input, shape index: {}]
  %s3 = inlined_call_operand.vmem [shape: f32[2,32], index: 3, kind: input, shape index: {}]
  %s4 = inlined_call_operand.vmem [shape: f32[1,32], index: 4, kind: input, shape index: {}]
  %s5 = inlined_call_operand.hbm [shape: f32[2,32], index: 5, kind: output, shape index: {}]
  %s6 = sld [smem:[#allocation0]]
  $region50: #{tpu_custom_call.1} parent=0
    _
  %s8 = ssub.s32 1, %s6
  %s9 = scalar_select 0, %s8, %s6
  $region1: #{tpu_custom_call.1} parent=0
    #allocation4 [shape = 'u8[65536]{0}', space=vmem, size = 0x10000, scoped, tag = 'input window, operand 0, single buffered']
    #allocation5 [shape = 's32[1]{0}', space=sflag, size = 0x4, scoped, tag = 'scoped memory for tpu_custom_call.1']
    #allocation6 [shape = 's32[1]{0}', space=sflag, size = 0x4, scoped, tag = 'scoped memory for tpu_custom_call.1']
    #allocation7 [shape = 'u8[1024]{0}', space=vmem, size = 0x400, scoped, tag = 'output window, operand 0, single buffered']
    %10 = vsyncpa [#allocation5], 0
    %11 = vsyncpa [#allocation6], 0
    // Predicated region
    $region2: #{tpu_custom_call.1} parent=1 // pred_check
      _
    $region3: #{tpu_custom_call.1} parent=1 // pred_check_branch
      %13 = sbr.rel (0) target = $region5
    $region4: #{tpu_custom_call.1} parent=1 // pred_region
      %s15 = ssub.s32 2048, 2048
      %16 = vsyncadd [#allocation5], %s15
      %s17 = sshll.u32 [#allocation4], 4
      %s18 = int_to_ptr.vmem [resolvable:$true] %s17
      %23 = dma.hbm_to_vmem [thread:$0]  %s0, 2048, %s18, [#allocation5], 256, 256, 16
    $region5: #{tpu_custom_call.1} parent=1 // pred_fallthru
      _
    // Predicated region
    $region6: #{tpu_custom_call.1} parent=1 // pred_check
      _
    $region7: #{tpu_custom_call.1} parent=1 // pred_check_branch
      %25 = sbr.rel (0) target = $region9
    $region8: #{tpu_custom_call.1} parent=1 // pred_region
      _
    $region9: #{tpu_custom_call.1} parent=1 // pred_fallthru
      _
    // Predicated region
    $region10: #{tpu_custom_call.1} parent=1 // pred_check
      _
    $region11: #{tpu_custom_call.1} parent=1 // pred_check_branch
      %27 = sbr.rel (0) target = $region13
    $region12: #{tpu_custom_call.1} parent=1 // pred_region
      _
    $region13: #{tpu_custom_call.1} parent=1 // pred_fallthru
      _
    // Predicated region
    $region14: #{tpu_custom_call.1} parent=1 // pred_check
      _
    $region15: #{tpu_custom_call.1} parent=1 // pred_check_branch
      %29 = sbr.rel (0) target = $region17
    $region16: #{tpu_custom_call.1} parent=1 // pred_region
      _
    $region17: #{tpu_custom_call.1} parent=1 // pred_fallthru
      _
    // Predicated region
    $region18: #{tpu_custom_call.1} parent=1 // pred_check
      _
    $region19: #{tpu_custom_call.1} parent=1 // pred_check_branch
      %31 = sbr.rel (0) target = $region21
    $region20: #{tpu_custom_call.1} parent=1 // pred_region
      _
    $region21: #{tpu_custom_call.1} parent=1 // pred_fallthru
      _
    // Predicated region
    $region22: #{tpu_custom_call.1} parent=1 // pred_check
      _
    $region23: #{tpu_custom_call.1} parent=1 // pred_check_branch
      %33 = sbr.rel (0) target = $region25
    $region24: #{tpu_custom_call.1} parent=1 // pred_region
      %34 = dma.done [#allocation5], 2048
    $region25: #{tpu_custom_call.1} parent=1 // pred_fallthru
      _
    %p35 = scmp.eq.s32.totalorder 0, 0
    %p36 = scmp.eq.s32.totalorder 0, 0
    %p37 = pnand %p35, %p36
    %p38 = pneg %p37
    // Predicated region
    $region26: #{tpu_custom_call.1} parent=1 // pred_check
      _
    $region27: #{tpu_custom_call.1} parent=1 // pred_check_branch
      %40 = sbr.rel (%p37) target = $region29
    $region28: #{tpu_custom_call.1} parent=1 // pred_region
      %vm41 = vcmask 9216
      %42 = vst.msk [vmem:[#allocation3] sm:$0x3] %vm41, 0.0
    $region29: #{tpu_custom_call.1} parent=1 // pred_fallthru
      _
    // Predicated region
    $region30: #{tpu_custom_call.1} parent=1 // pred_check
      %p43 = pneg %p36
    $region31: #{tpu_custom_call.1} parent=1 // pred_check_branch
      %45 = sbr.rel (%p43) target = $region33
    $region32: #{tpu_custom_call.1} parent=1 // pred_region
      %vm46 = vcmask 254976
      %47 = vst.msk [vmem:[#allocation2] sm:$0x3] %vm46, 0.0
    $region33: #{tpu_custom_call.1} parent=1 // pred_fallthru
      _
    %v48 = vld [vmem:[#allocation4] sm:$0xff]
    %v49 = vld [vmem:[#allocation4 + $0x8] sm:$0xff]
    %v50 = vld [vmem:[#allocation4 + $0x10] sm:$0xff]
    %v51 = vld [vmem:[#allocation4 + $0x18] sm:$0xff]
    %v52 = vld [vmem:[#allocation4 + $0x20] sm:$0xff]
    %v53 = vld [vmem:[#allocation4 + $0x28] sm:$0xff]
    %v54 = vld [vmem:[#allocation4 + $0x30] sm:$0xff]
    %v55 = vld [vmem:[#allocation4 + $0x38] sm:$0xff]
    %v56 = vld [vmem:[#allocation4 + $0x40] sm:$0xff]
    %v57 = vld [vmem:[#allocation4 + $0x48] sm:$0xff]
    %v58 = vld [vmem:[#allocation4 + $0x50] sm:$0xff]
    %v59 = vld [vmem:[#allocation4 + $0x58] sm:$0xff]
    %v60 = vld [vmem:[#allocation4 + $0x60] sm:$0xff]
    %v61 = vld [vmem:[#allocation4 + $0x68] sm:$0xff]
    %v62 = vld [vmem:[#allocation4 + $0x70] sm:$0xff]
    %v63 = vld [vmem:[#allocation4 + $0x78] sm:$0xff]
    %v64 = vld [vmem:[#allocation2] sm:$0x3]
    %v65 = vadd.f32 %v48, %v49
    %66 = vadd.xlane.f32.xlu0 %v65
    %v67 = vpop.xlane.xlu0 %66
    %v68 = vadd.f32 %v50, %v51
    %69 = vadd.xlane.f32.xlu0 %v68
    %v70 = vpop.xlane.xlu0 %69
    %v71 = vadd.f32 %v52, %v53
    %72 = vadd.xlane.f32.xlu0 %v71
    %v73 = vpop.xlane.xlu0 %72
    %v74 = vadd.f32 %v54, %v55
    %75 = vadd.xlane.f32.xlu0 %v74
    %v76 = vpop.xlane.xlu0 %75
    %v77 = vadd.f32 %v56, %v57
    %78 = vadd.xlane.f32.xlu0 %v77
    %v79 = vpop.xlane.xlu0 %78
    %v80 = vadd.f32 %v58, %v59
    %81 = vadd.xlane.f32.xlu0 %v80
    %v82 = vpop.xlane.xlu0 %81
    %v83 = vadd.f32 %v60, %v61
    %84 = vadd.xlane.f32.xlu0 %v83
    %v85 = vpop.xlane.xlu0 %84
    %v86 = vadd.f32 %v62, %v63
    %87 = vadd.xlane.f32.xlu0 %v86
    %v88 = vpop.xlane.xlu0 %87
    %v97 = vlaneseq
    %v98 = vand.u32 %v97, 127
    %v99 = vlaneseq
    %v100 = vshrl.u32 %v99, 7
    %v101 = vsub.s32 %v98, %v100
    %v102 = vrot.slane %v67, %v101
    %v103 = vadd.s32 %v98, 4294967288
    %v104 = vlaneseq
    %v105 = vshrl.u32 %v104, 7
    %v106 = vsub.s32 %v103, %v105
    %v107 = vrot.slane %v70, %v106
    %vm108 = vcmask 130112
    %v109 = vsel %vm108, %v107, %v102
    %v110 = vadd.s32 %v98, 4294967280
    %v111 = vlaneseq
    %v112 = vshrl.u32 %v111, 7
    %v113 = vsub.s32 %v110, %v112
    %v114 = vrot.slane %v73, %v113
    %vm115 = vcmask 195712
    %v116 = vsel %vm115, %v114, %v109
    %v117 = vadd.s32 %v98, 4294967272
    %v118 = vlaneseq
    %v119 = vshrl.u32 %v118, 7
    %v120 = vsub.s32 %v117, %v119
    %v121 = vrot.slane %v76, %v120
    %vm122 = vcmask 261312
    %v123 = vsel %vm122, %v121, %v116
    %v124 = vlaneseq
    %v125 = vshrl.u32 %v124, 7
    %v126 = vsub.s32 %v98, %v125
    %v127 = vrot.slane %v79, %v126
    %v128 = vlaneseq
    %v129 = vshrl.u32 %v128, 7
    %v130 = vsub.s32 %v103, %v129
    %v131 = vrot.slane %v82, %v130
    %v132 = vsel %vm108, %v131, %v127
    %v133 = vlaneseq
    %v134 = vshrl.u32 %v133, 7
    %v135 = vsub.s32 %v110, %v134
    %v136 = vrot.slane %v85, %v135
    %v137 = vsel %vm115, %v136, %v132
    %v138 = vlaneseq
    %v139 = vshrl.u32 %v138, 7
    %v140 = vsub.s32 %v117, %v139
    %v141 = vrot.slane %v88, %v140
    %v142 = vsel %vm122, %v141, %v137
    %vm143 = vcmask 1041409
    %v144 = vsel %vm143, %v142, %v123
    %v146 = vadd.f32 %v64, %v144
    %vm147 = vcmask 254976
    %148 = vst.msk [vmem:[#allocation2] sm:$0x3] %vm147, %v146
    // Predicated region
    $region34: #{tpu_custom_call.1} parent=1 // pred_check
      %p149 = pneg %p36
    $region35: #{tpu_custom_call.1} parent=1 // pred_check_branch
      %151 = sbr.rel (%p149) target = $region37
    $region36: #{tpu_custom_call.1} parent=1 // pred_region
      %v152 = vld [vmem:[#allocation2] sm:$0x3]
      %v153 = vmul.f32 %v152, 0.00390625
      %v154 = vld [vmem:[#allocation3] sm:$0x3]
      %v155 = vld [vmem:[%s1] sm:$0xff]
      %v156 = vld [vmem:[%s1 + $0x8] sm:$0xff]
      %v157 = vld [vmem:[%s1 + $0x10] sm:$0xff]
      %v158 = vld [vmem:[%s1 + $0x18] sm:$0xff]
      %vm159 = vcmask 261120
      %v161 = vsel %vm159, %v153, 0
      %163 = vmatprep.subr.mxu0 0.0
      %164 = vmatpush1.msra.mxu0 %v155
      %165 = vmatprep.subr.mxu0 0.0
      %166 = vmatpush1.msra.mxu0 %v156
      %167 = vmatprep.subr.mxu0 0.0
      %168 = vmatpush1.msra.mxu0 %v157
      %169 = vmatprep.subr.mxu0 0.0
      %170 = vmatpush1.msra.mxu0 %v158
      %171 = vmatprep.subr.mxu0 0.0
      %172 = vmatpush1.msra.mxu0 0.0
      %173 = vmatprep.subr.mxu0 0.0
      %174 = vmatpush1.msra.mxu0 0.0
      %175 = vmatprep.subr.mxu0 0.0
      %176 = vmatpush1.msra.mxu0 0.0
      %177 = vmatprep.subr.mxu0 0.0
      %178 = vmatpush1.msra.mxu0 0.0
      %179 = vmatprep.subr.mxu0 0.0
      %180 = vmatpush1.msra.mxu0 0.0
      %181 = vmatprep.subr.mxu0 0.0
      %182 = vmatpush1.msra.mxu0 0.0
      %183 = vmatprep.subr.mxu0 0.0
      %184 = vmatpush1.msra.mxu0 0.0
      %185 = vmatprep.subr.mxu0 0.0
      %186 = vmatpush1.msra.mxu0 0.0
      %187 = vmatprep.subr.mxu0 0.0
      %188 = vmatpush1.msra.mxu0 0.0
      %189 = vmatprep.subr.mxu0 0.0
      %190 = vmatpush1.msra.mxu0 0.0
      %191 = vmatprep.subr.mxu0 0.0
      %192 = vmatpush1.msra.mxu0 0.0
      %193 = vmatprep.subr.mxu0 0.0
      %194 = vmatpush1.msra.mxu0 0.0
      %195 = vmatprep.subr.mxu0 0.0
      %196 = vmatpush1.msra.mxu0 0.0
      %197 = vmatprep.subr.mxu0 0.0
      %198 = vmatpush1.msra.mxu0 0.0
      %199 = vmatprep.subr.mxu0 0.0
      %200 = vmatpush1.msra.mxu0 0.0
      %201 = vmatprep.subr.mxu0 0.0
      %202 = vmatpush1.msra.mxu0 0.0
      %203 = vmatprep.subr.mxu0 0.0
      %204 = vmatpush1.msra.mxu0 0.0
      %205 = vmatprep.subr.mxu0 0.0
      %206 = vmatpush1.msra.mxu0 0.0
      %207 = vmatprep.subr.mxu0 0.0
      %208 = vmatpush1.msra.mxu0 0.0
      %209 = vmatprep.subr.mxu0 0.0
      %210 = vmatpush1.msra.mxu0 0.0
      %211 = vmatprep.subr.mxu0 0.0
      %212 = vmatpush1.msra.mxu0 0.0
      %213 = vmatprep.subr.mxu0 0.0
      %214 = vmatpush1.msra.mxu0 0.0
      %215 = vmatprep.subr.mxu0 0.0
      %216 = vmatpush1.msra.mxu0 0.0
      %217 = vmatprep.subr.mxu0 0.0
      %218 = vmatpush1.msra.mxu0 0.0
      %219 = vmatprep.subr.mxu0 0.0
      %220 = vmatpush1.msra.mxu0 0.0
      %221 = vmatprep.subr.mxu0 0.0
      %222 = vmatpush1.msra.mxu0 0.0
      %223 = vmatprep.subr.mxu0 0.0
      %224 = vmatpush1.msra.mxu0 0.0
      %225 = vmatprep.subr.mxu0 0.0
      %226 = vmatpush1.msra.mxu0 0.0
      %227 = vmatprep.mubr.f32.mxu0 0.0
      %228 = vmatmul.mubr.f32.gmra.mrb[0].mxu0 %v161
      %v229 = vpop.f32.mrb[0].mxu0
      %v230 = vadd.f32 0.0, %v229
      %v231 = vpop.f32.mrb[0].mxu0
      %232 = vdwg.mxu0
      %v233 = vadd.f32 %v154, %v230
      %vm234 = vcmask 9216
      %235 = vst.msk [vmem:[#allocation3] sm:$0x3] %vm234, %v233
    $region37: #{tpu_custom_call.1} parent=1 // pred_fallthru
      _
    // Predicated region
    $region38: #{tpu_custom_call.1} parent=1 // pred_check
      _
    $region39: #{tpu_custom_call.1} parent=1 // pred_check_branch
      %237 = sbr.rel (%p37) target = $region41
    $region40: #{tpu_custom_call.1} parent=1 // pred_region
      %v238 = vld [vmem:[#allocation3] sm:$0x3]
      %v239 = vld [vmem:[%s2] sm:$0x1]
      %v241 = vlaneseq
      %v242 = vshrl.u32 %v241, 7
      %v243 = vsub.s32 0, %v242
      %v244 = vrot.slane %v239, %v243
      %v246 = vadd.f32 %v238, %v244
      %v247 = vmax.f32 %v246, 0.0
      %v248 = vld [vmem:[%s3] sm:$0x3]
      %v249 = vld [vmem:[%s4] sm:$0x1]
      %v251 = vlaneseq
      %v252 = vshrl.u32 %v251, 7
      %v253 = vsub.s32 0, %v252
      %v254 = vrot.slane %v249, %v253
      %vm256 = vcmask 15360
      %v258 = vsel %vm256, %v247, 0
      %vm260 = vcmask 1041408
      %v262 = vsel %vm260, %v248, 0
      %264 = vmatprep.subr.mxu0 0.0
      %265 = vmatpush1.msra.mxu0 %v262
      %266 = vmatprep.subr.mxu0 0.0
      %267 = vmatpush1.msra.mxu0 0.0
      %268 = vmatprep.subr.mxu0 0.0
      %269 = vmatpush1.msra.mxu0 0.0
      %270 = vmatprep.subr.mxu0 0.0
      %271 = vmatpush1.msra.mxu0 0.0
      %272 = vmatprep.subr.mxu0 0.0
      %273 = vmatpush1.msra.mxu0 0.0
      %274 = vmatprep.subr.mxu0 0.0
      %275 = vmatpush1.msra.mxu0 0.0
      %276 = vmatprep.subr.mxu0 0.0
      %277 = vmatpush1.msra.mxu0 0.0
      %278 = vmatprep.subr.mxu0 0.0
      %279 = vmatpush1.msra.mxu0 0.0
      %280 = vmatprep.subr.mxu0 0.0
      %281 = vmatpush1.msra.mxu0 0.0
      %282 = vmatprep.subr.mxu0 0.0
      %283 = vmatpush1.msra.mxu0 0.0
      %284 = vmatprep.subr.mxu0 0.0
      %285 = vmatpush1.msra.mxu0 0.0
      %286 = vmatprep.subr.mxu0 0.0
      %287 = vmatpush1.msra.mxu0 0.0
      %288 = vmatprep.subr.mxu0 0.0
      %289 = vmatpush1.msra.mxu0 0.0
      %290 = vmatprep.subr.mxu0 0.0
      %291 = vmatpush1.msra.mxu0 0.0
      %292 = vmatprep.subr.mxu0 0.0
      %293 = vmatpush1.msra.mxu0 0.0
      %294 = vmatprep.subr.mxu0 0.0
      %295 = vmatpush1.msra.mxu0 0.0
      %296 = vmatprep.subr.mxu0 0.0
      %297 = vmatpush1.msra.mxu0 0.0
      %298 = vmatprep.subr.mxu0 0.0
      %299 = vmatpush1.msra.mxu0 0.0
      %300 = vmatprep.subr.mxu0 0.0
      %301 = vmatpush1.msra.mxu0 0.0
      %302 = vmatprep.subr.mxu0 0.0
      %303 = vmatpush1.msra.mxu0 0.0
      %304 = vmatprep.subr.mxu0 0.0
      %305 = vmatpush1.msra.mxu0 0.0
      %306 = vmatprep.subr.mxu0 0.0
      %307 = vmatpush1.msra.mxu0 0.0
      %308 = vmatprep.subr.mxu0 0.0
      %309 = vmatpush1.msra.mxu0 0.0
      %310 = vmatprep.subr.mxu0 0.0
      %311 = vmatpush1.msra.mxu0 0.0
      %312 = vmatprep.subr.mxu0 0.0
      %313 = vmatpush1.msra.mxu0 0.0
      %314 = vmatprep.subr.mxu0 0.0
      %315 = vmatpush1.msra.mxu0 0.0
      %316 = vmatprep.subr.mxu0 0.0
      %317 = vmatpush1.msra.mxu0 0.0
      %318 = vmatprep.subr.mxu0 0.0
      %319 = vmatpush1.msra.mxu0 0.0
      %320 = vmatprep.subr.mxu0 0.0
      %321 = vmatpush1.msra.mxu0 0.0
      %322 = vmatprep.subr.mxu0 0.0
      %323 = vmatpush1.msra.mxu0 0.0
      %324 = vmatprep.subr.mxu0 0.0
      %325 = vmatpush1.msra.mxu0 0.0
      %326 = vmatprep.subr.mxu0 0.0
      %327 = vmatpush1.msra.mxu0 0.0
      %328 = vmatprep.mubr.f32.mxu0 0.0
      %329 = vmatmul.mubr.f32.gmra.mrb[0].mxu0 %v258
      %v330 = vpop.f32.mrb[0].mxu0
      %v331 = vadd.f32 %v254, %v330
      %v332 = vpop.f32.mrb[0].mxu0
      %333 = vdwg.mxu0
      %v334 = vxor.u32 %v331, 2147483648
      %v335 = vmul.f32 %v334, 1.442695
      %v336 = vpow.pop %v335
      %v337 = vadd.f32 %v336, 1.0
      %v338 = vrcp.pop %v337
      %v339 = vmul.f32 1.0, %v338
      %340 = vst.msk [vmem:[#allocation7] sm:$0x3] %vm147, %v339
    $region41: #{tpu_custom_call.1} parent=1 // pred_fallthru
      _
    // Predicated region
    $region42: #{tpu_custom_call.1} parent=1 // pred_check
      _
    $region43: #{tpu_custom_call.1} parent=1 // pred_check_branch
      %342 = sbr.rel (0) target = $region45
    $region44: #{tpu_custom_call.1} parent=1 // pred_region
      %s344 = ssub.s32 32, 32
      %345 = vsyncadd [#allocation6], %s344
      %s347 = sshll.u32 [#allocation7], 4
      %s348 = int_to_ptr.vmem [resolvable:$true] %s347
      %350 = dma.vmem_to_hbm [thread:$0]  %s348, 32, %s5, [#allocation6]
    $region45: #{tpu_custom_call.1} parent=1 // pred_fallthru
      _
    // Predicated region
    $region46: #{tpu_custom_call.1} parent=1 // pred_check
      _
    $region47: #{tpu_custom_call.1} parent=1 // pred_check_branch
      %352 = sbr.rel (0) target = $region49
    $region48: #{tpu_custom_call.1} parent=1 // pred_region
      %353 = dma.done [#allocation6], 32
    $region49: #{tpu_custom_call.1} parent=1 // pred_fallthru
      _
    %354 = vsyncpa [#allocation5], 1
    %355 = vsyncpa [#allocation6], 1

</llo_original>
